<compile_context>
chip_gen: v5e
topology: v5e:2x2
jax: 0.10.0
libtpu: 0.0.40
codegen_flags: <defaults>
</compile_context>

<pallas_src>
import functools

import numpy as np
import jax
import jax.numpy as jnp
from jax.experimental import pallas as pl
from jax.experimental.pallas import tpu as pltpu

BN_EPS = 1e-5
LANE = 128


def _round_up(n, m):
    return ((n + m - 1) // m) * m


# ----------------------------------------------------------------------------
# Pallas kernel: one grid step == one BatchNorm1d -> MaskedLinear -> ReLU layer
# ----------------------------------------------------------------------------
def made_layer_kernel(x_ref, gamma_ref, beta_ref, wm_ref, bias_ref, o_ref,
                      h_ref, *, n_layers: int, nin: int):
    """x_ref:     [B, nin]  f32  (unpadded input; same block every step -> one DMA)
       gamma_ref: [1, 1, P] f32  (this layer's gamma, pad value 1)
       beta_ref:  [1, 1, P] f32  (this layer's beta,  pad value 0)
       wm_ref:    [1, P, P] bf16 (this layer's mask-folded W^T, zero padded)
       bias_ref:  [1, 1, P] f32  (this layer's bias,  pad value 0)
       o_ref:     [B, P]    f32  (written only on the final layer)
       h_ref:     [B, P]    f32  VMEM scratch carrying activations across layers
    """
    l = pl.program_id(0)

    @pl.when(l == 0)
    def _():
        # Zero-extend the unpadded input into the padded activation scratch.
        # Zeroing is REQUIRED: padded lanes get BN scale ~= rsqrt(BN_EPS).
        h_ref[...] = jnp.zeros_like(h_ref)
        h_ref[:, :nin] = x_ref[...]

    h = h_ref[...]                                                   # [B, P] f32
    inv_b = jnp.float32(1.0 / h.shape[0])

    # One-pass BatchNorm1d training-mode stats (biased variance), f32 accum.
    s = jnp.sum(h, axis=0, keepdims=True)                            # [1, P]
    ss = jnp.sum(h * h, axis=0, keepdims=True)                       # [1, P]
    mean = s * inv_b
    var = jnp.maximum(ss * inv_b - mean * mean, 0.0)                 # guard cancellation
    scale = gamma_ref[0] * jax.lax.rsqrt(var + BN_EPS)               # [1, P]
    shift = beta_ref[0] - mean * scale                               # [1, P]
    hn = h * scale + shift                                           # single FMA / elem

    # MaskedLinear on the MXU: bf16 operands, f32 accumulation.
    y = jnp.dot(hn.astype(jnp.bfloat16), wm_ref[0],
                preferred_element_type=jnp.float32) + bias_ref[0]    # [B, P]

    @pl.when(l < n_layers - 1)
    def _():
        h_ref[...] = jnp.maximum(y, 0.0)      # ReLU (net.pop() drops the last one)

    @pl.when(l == n_layers - 1)
    def _():
        o_ref[...] = y


@functools.partial(jax.jit, static_argnames=("nin", "nout", "n_layers"))
def made_forward(x, gamma, beta, wm, bias, *, nin, nout, n_layers):
    B = x.shape[0]
    P = wm.shape[-1]
    kernel = functools.partial(made_layer_kernel, n_layers=n_layers, nin=nin)

    cost = pl.CostEstimate(
        flops=2 * B * P * P * n_layers + 8 * B * P * n_layers,
        transcendentals=P * n_layers,
        bytes_accessed=(wm.size * 2 + x.size * 4 + B * P * 4
                        + (gamma.size + beta.size + bias.size) * 4),
    )

    out = pl.pallas_call(
        kernel,
        out_shape=jax.ShapeDtypeStruct((B, P), jnp.float32),
        grid=(n_layers,),
        in_specs=[
            pl.BlockSpec((B, nin), lambda l: (0, 0)),        # x, unpadded, fetched once
            pl.BlockSpec((1, 1, P), lambda l: (l, 0, 0)),    # gamma  (per layer)
            pl.BlockSpec((1, 1, P), lambda l: (l, 0, 0)),    # beta   (per layer)
            pl.BlockSpec((1, P, P), lambda l: (l, 0, 0)),    # masked W^T bf16 (per layer)
            pl.BlockSpec((1, 1, P), lambda l: (l, 0, 0)),    # bias   (per layer)
        ],
        out_specs=pl.BlockSpec((B, P), lambda l: (0, 0)),    # constant block -> one writeback
        scratch_shapes=[pltpu.VMEM((B, P), jnp.float32)],    # activation carry
        compiler_params=pltpu.CompilerParams(
            dimension_semantics=("arbitrary",)),
        cost_estimate=cost,
    )(x.astype(jnp.float32), gamma, beta, wm, bias)
    return out[:, :nout]


# ----------------------------------------------------------------------------
# One-time operand preparation: fold masks, transpose, pad to 128 lanes, bf16
# ----------------------------------------------------------------------------
def prepare_made_operands(params, masks, P):
    gammas, betas, biases, wms = [], [], [], []
    for p, mk in zip(params, masks):
        w = np.asarray(p["w"], np.float32)                # [out, in]
        h1, h0 = w.shape
        g = np.ones((P,), np.float32)
        g[:h0] = np.asarray(p["gamma"], np.float32)
        bt = np.zeros((P,), np.float32)
        bt[:h0] = np.asarray(p["beta"], np.float32)
        bs = np.zeros((P,), np.float32)
        bs[:h1] = np.asarray(p["b"], np.float32)
        wm = np.zeros((P, P), np.float32)
        wm[:h0, :h1] = np.asarray(mk, np.float32) * w.T   # mask folded, [in, out]
        gammas.append(g); betas.append(bt); biases.append(bs); wms.append(wm)
    gamma = jnp.asarray(np.stack(gammas)[:, None, :], jnp.float32)    # [L, 1, P]
    beta = jnp.asarray(np.stack(betas)[:, None, :], jnp.float32)      # [L, 1, P]
    bias = jnp.asarray(np.stack(biases)[:, None, :], jnp.float32)     # [L, 1, P]
    wmj = jnp.asarray(np.stack(wms), jnp.bfloat16)                    # [L, P, P]
    return gamma, beta, wmj, bias


# ----------------------------------------------------------------------------
# MADE mask construction (mirrors MADE.update_masks, numpy on host)
# ----------------------------------------------------------------------------
def build_made_masks(nin, hidden_sizes, nout, seed=0, natural_ordering=False):
    L = len(hidden_sizes)
    rng = np.random.RandomState(seed)
    m = {}
    m[-1] = np.arange(nin) if natural_ordering else rng.permutation(nin)
    for l in range(L):
        m[l] = rng.randint(m[l - 1].min(), nin - 1, size=hidden_sizes[l])
    masks = [m[l - 1][:, None] <= m[l][None, :] for l in range(L)]
    masks.append(m[L - 1][:, None] < m[-1][None, :])
    if nout > nin:
        k = nout // nin
        masks[-1] = np.concatenate([masks[-1]] * k, axis=1)
    # (in_features, out_features) orientation.
    return [mk.astype(np.float32) for mk in masks]


# ----------------------------------------------------------------------------
# Deterministic parameter construction (mirrors MADE.__init__ / init_weights)
# ----------------------------------------------------------------------------
def build_made_params(key, nin, hidden_sizes, nout, bias_init=0.01, gain=10.0):
    hs = [nin] + list(hidden_sizes) + [nout]
    params = []
    for h0, h1 in zip(hs, hs[1:]):
        key, wk = jax.random.split(key)
        # xavier_normal_ with gain: std = gain * sqrt(2 / (fan_in + fan_out))
        std = gain * np.sqrt(2.0 / (h0 + h1))
        w = jax.random.normal(wk, (h1, h0), jnp.float32) * std   # [out, in]
        b = jnp.full((h1,), bias_init, jnp.float32)
        gamma = jnp.ones((h0,), jnp.float32)                     # BN default init
        beta = jnp.zeros((h0,), jnp.float32)
        params.append(dict(gamma=gamma, beta=beta, w=w, b=b))
    return params


# ----------------------------------------------------------------------------
# Pure-JAX reference (same bf16-MXU numerics, for verification only)
# ----------------------------------------------------------------------------
def made_forward_ref(x, params, masks):
    n_layers = len(params)
    h = x.astype(jnp.float32)
    for i, (p, mk) in enumerate(zip(params, masks)):
        mean = jnp.mean(h, axis=0, keepdims=True)
        var = jnp.mean((h - mean) ** 2, axis=0, keepdims=True)
        scale = p["gamma"] * jax.lax.rsqrt(var + BN_EPS)
        shift = p["beta"] - mean * scale
        hn = h * scale + shift
        wmb = (jnp.asarray(mk) * p["w"].T).astype(jnp.bfloat16)
        h = jnp.dot(hn.astype(jnp.bfloat16), wmb,
                    preferred_element_type=jnp.float32) + p["b"]
        if i < n_layers - 1:
            h = jnp.maximum(h, 0.0)
    return h


if __name__ == "__main__":
    # Small MADE config: nin=8, hidden=[32, 32], nout=16 (k=2 output chunks).
    # batch=16: multiple of 16 so bf16 LHS sublanes are fully packed.
    nin, hidden_sizes, nout = 8, [32, 32], 16
    batch = 16
    n_layers = len(hidden_sizes) + 1
    P = _round_up(max([nin] + list(hidden_sizes) + [nout]), LANE)

    key = jax.random.PRNGKey(0)
    key, xk = jax.random.split(key)
    x = jax.random.normal(xk, (batch, nin), jnp.float32)

    masks = build_made_masks(nin, hidden_sizes, nout, seed=0,
                             natural_ordering=False)
    params = build_made_params(key, nin, hidden_sizes, nout,
                               bias_init=0.01, gain=10.0)
    gamma, beta, wm, bias = prepare_made_operands(params, masks, P)

    out = made_forward(x, gamma, beta, wm, bias,
                       nin=nin, nout=nout, n_layers=n_layers)
    out = jax.block_until_ready(out)

    ref = jax.block_until_ready(made_forward_ref(x, params, masks))
    # bf16 MXU operands (in both kernel and reference) -> slightly relaxed
    # tolerance vs. a pure-f32 check.
    np.testing.assert_allclose(np.asarray(out), np.asarray(ref),
                               rtol=2e-2, atol=1e-2)

    assert out.shape == (batch, nout)
    print("KERNEL_OK")
</pallas_src>

<mosaic_0001>
module attributes {stable_mosaic.version = 11 : i64} {
  func.func @made_layer_kernel(%arg0: i32, %arg1: memref<16x8xf32, #tpu.memory_space<vmem>>, %arg2: memref<1x1x128xf32, #tpu.memory_space<vmem>>, %arg3: memref<1x1x128xf32, #tpu.memory_space<vmem>>, %arg4: memref<1x128x128xbf16, #tpu.memory_space<vmem>>, %arg5: memref<1x1x128xf32, #tpu.memory_space<vmem>>, %arg6: memref<16x128xf32, #tpu.memory_space<vmem>>, %arg7: memref<16x128xf32, #tpu.memory_space<vmem>>) attributes {dimension_semantics = [#tpu.dimension_semantics<arbitrary>], iteration_bounds = array<i64: 3>, scalar_prefetch = 0 : i64, scratch_operands = 1 : i64, tpu.core_type = #tpu.core_type<tc>, window_params = [{pipeline_mode = #tpu.pipeline_mode<synchronous>, transform_indices = @transform_0, window_bounds = array<i64: 16, 8>}, {transform_indices = @transform_1, window_bounds = array<i64: 1, 1, 128>}, {transform_indices = @transform_2, window_bounds = array<i64: 1, 1, 128>}, {transform_indices = @transform_3, window_bounds = array<i64: 1, 128, 128>}, {transform_indices = @transform_4, window_bounds = array<i64: 1, 1, 128>}, {pipeline_mode = #tpu.pipeline_mode<synchronous>, transform_indices = @transform_5, window_bounds = array<i64: 16, 128>}]} {
    %c0_i32 = arith.constant 0 : i32
    %0 = arith.cmpi eq, %arg0, %c0_i32 : i32
    %1 = arith.extui %0 : i1 to i32
    %c0_i32_0 = arith.constant 0 : i32
    %2 = arith.cmpi ne, %1, %c0_i32_0 : i32
    scf.if %2 {
      %cst_23 = arith.constant 0.000000e+00 : f32
      %45 = vector.broadcast %cst_23 : f32 to vector<16x128xf32>
      %c0_24 = arith.constant 0 : index
      %c0_25 = arith.constant 0 : index
      %46 = vector.load %arg7[%c0_24, %c0_25] : memref<16x128xf32, #tpu.memory_space<vmem>>, vector<16x128xf32>
      tpu.vector_store %arg7[%c0_24, %c0_25], %45 {strides = array<i32>} : memref<16x128xf32, #tpu.memory_space<vmem>>, vector<16x128xf32>,
      %c0_26 = arith.constant 0 : index
      %c0_27 = arith.constant 0 : index
      %47 = vector.load %arg1[%c0_26, %c0_27] : memref<16x8xf32, #tpu.memory_space<vmem>>, vector<16x8xf32>
      %c0_28 = arith.constant 0 : index
      %c0_29 = arith.constant 0 : index
      %48 = vector.load %arg7[%c0_28, %c0_29] : memref<16x128xf32, #tpu.memory_space<vmem>>, vector<16x8xf32>
      tpu.vector_store %arg7[%c0_28, %c0_29], %47 {strides = array<i32>} : memref<16x128xf32, #tpu.memory_space<vmem>>, vector<16x8xf32>,
    } else {
    }
    %c0 = arith.constant 0 : index
    %c0_1 = arith.constant 0 : index
    %3 = vector.load %arg7[%c0, %c0_1] : memref<16x128xf32, #tpu.memory_space<vmem>>, vector<16x128xf32>
    %cst = arith.constant dense<0.000000e+00> : vector<128xf32>
    %4 = vector.multi_reduction <add>, %3, %cst [0] : vector<16x128xf32> to vector<128xf32>
    %5 = vector.shape_cast %4 : vector<128xf32> to vector<1x128xf32>
    %6 = arith.mulf %3, %3 : vector<16x128xf32>
    %cst_2 = arith.constant dense<0.000000e+00> : vector<128xf32>
    %7 = vector.multi_reduction <add>, %6, %cst_2 [0] : vector<16x128xf32> to vector<128xf32>
    %8 = vector.shape_cast %7 : vector<128xf32> to vector<1x128xf32>
    %cst_3 = arith.constant 6.250000e-02 : f32
    %9 = vector.broadcast %cst_3 : f32 to vector<1x128xf32>
    %10 = arith.mulf %5, %9 : vector<1x128xf32>
    %cst_4 = arith.constant 6.250000e-02 : f32
    %11 = vector.broadcast %cst_4 : f32 to vector<1x128xf32>
    %12 = arith.mulf %8, %11 : vector<1x128xf32>
    %13 = arith.mulf %10, %10 : vector<1x128xf32>
    %14 = arith.subf %12, %13 : vector<1x128xf32>
    %cst_5 = arith.constant 0.000000e+00 : f32
    %15 = vector.broadcast %cst_5 : f32 to vector<1x128xf32>
    %16 = arith.maximumf %14, %15 : vector<1x128xf32>
    %c0_6 = arith.constant 0 : index
    %c0_7 = arith.constant 0 : index
    %c0_8 = arith.constant 0 : index
    %17 = vector.load %arg2[%c0_6, %c0_7, %c0_8] : memref<1x1x128xf32, #tpu.memory_space<vmem>>, vector<1x1x128xf32>
    %18 = vector.shape_cast %17 : vector<1x1x128xf32> to vector<1x128xf32>
    %cst_9 = arith.constant 9.99999974E-6 : f32
    %19 = vector.broadcast %cst_9 : f32 to vector<1x128xf32>
    %20 = arith.addf %16, %19 : vector<1x128xf32>
    %21 = math.rsqrt %20 : vector<1x128xf32>
    %22 = arith.mulf %18, %21 : vector<1x128xf32>
    %c0_10 = arith.constant 0 : index
    %c0_11 = arith.constant 0 : index
    %c0_12 = arith.constant 0 : index
    %23 = vector.load %arg3[%c0_10, %c0_11, %c0_12] : memref<1x1x128xf32, #tpu.memory_space<vmem>>, vector<1x1x128xf32>
    %24 = vector.shape_cast %23 : vector<1x1x128xf32> to vector<1x128xf32>
    %25 = arith.mulf %10, %22 : vector<1x128xf32>
    %26 = arith.subf %24, %25 : vector<1x128xf32>
    %27 = vector.broadcast %22 : vector<1x128xf32> to vector<16x128xf32>
    %28 = arith.mulf %3, %27 : vector<16x128xf32>
    %29 = vector.broadcast %26 : vector<1x128xf32> to vector<16x128xf32>
    %30 = arith.addf %28, %29 : vector<16x128xf32>
    %31 = arith.truncf %30 : vector<16x128xf32> to vector<16x128xbf16>
    %c0_13 = arith.constant 0 : index
    %c0_14 = arith.constant 0 : index
    %c0_15 = arith.constant 0 : index
    %32 = vector.load %arg4[%c0_13, %c0_14, %c0_15] : memref<1x128x128xbf16, #tpu.memory_space<vmem>>, vector<1x128x128xbf16>
    %33 = vector.shape_cast %32 : vector<1x128x128xbf16> to vector<128x128xbf16>
    %cst_16 = arith.constant dense<0.000000e+00> : vector<16x128xf32>
    %34 = tpu.matmul %31, %33, %cst_16 {dimension_numbers = #tpu.dot_dimension_numbers<[1], [0], [0], [1], [0, 0, 1, 1], [], []>} : vector<16x128xbf16>, vector<128x128xbf16>, vector<16x128xf32> -> vector<16x128xf32>
    %c0_17 = arith.constant 0 : index
    %c0_18 = arith.constant 0 : index
    %c0_19 = arith.constant 0 : index
    %35 = vector.load %arg5[%c0_17, %c0_18, %c0_19] : memref<1x1x128xf32, #tpu.memory_space<vmem>>, vector<1x1x128xf32>
    %36 = vector.shape_cast %35 : vector<1x1x128xf32> to vector<1x128xf32>
    %37 = vector.broadcast %36 : vector<1x128xf32> to vector<16x128xf32>
    %38 = arith.addf %34, %37 : vector<16x128xf32>
    %c2_i32 = arith.constant 2 : i32
    %39 = arith.cmpi slt, %arg0, %c2_i32 : i32
    %40 = arith.extui %39 : i1 to i32
    %c0_i32_20 = arith.constant 0 : i32
    %41 = arith.cmpi ne, %40, %c0_i32_20 : i32
    scf.if %41 {
      %cst_23 = arith.constant 0.000000e+00 : f32
      %45 = vector.broadcast %cst_23 : f32 to vector<16x128xf32>
      %46 = arith.maximumf %38, %45 : vector<16x128xf32>
      %c0_24 = arith.constant 0 : index
      %c0_25 = arith.constant 0 : index
      %47 = vector.load %arg7[%c0_24, %c0_25] : memref<16x128xf32, #tpu.memory_space<vmem>>, vector<16x128xf32>
      tpu.vector_store %arg7[%c0_24, %c0_25], %46 {strides = array<i32>} : memref<16x128xf32, #tpu.memory_space<vmem>>, vector<16x128xf32>,
    } else {
    }
    %c2_i32_21 = arith.constant 2 : i32
    %42 = arith.cmpi eq, %arg0, %c2_i32_21 : i32
    %43 = arith.extui %42 : i1 to i32
    %c0_i32_22 = arith.constant 0 : i32
    %44 = arith.cmpi ne, %43, %c0_i32_22 : i32
    scf.if %44 {
      %c0_23 = arith.constant 0 : index
      %c0_24 = arith.constant 0 : index
      %45 = vector.load %arg6[%c0_23, %c0_24] : memref<16x128xf32, #tpu.memory_space<vmem>>, vector<16x128xf32>
      tpu.vector_store %arg6[%c0_23, %c0_24], %38 {strides = array<i32>} : memref<16x128xf32, #tpu.memory_space<vmem>>, vector<16x128xf32>,
    } else {
    }
    return
  }
  func.func @transform_0(%arg0: i32) -> (i32, i32) {
    %c0_i32 = arith.constant 0 : i32
    %c0_i32_0 = arith.constant 0 : i32
    %c0_i32_1 = arith.constant 0 : i32
    return %c0_i32, %c0_i32_0 : i32, i32
  }
  func.func @transform_1(%arg0: i32) -> (i32, i32, i32) {
    %c0_i32 = arith.constant 0 : i32
    %c0_i32_0 = arith.constant 0 : i32
    %c0_i32_1 = arith.constant 0 : i32
    return %arg0, %c0_i32, %c0_i32_0 : i32, i32, i32
  }
  func.func @transform_2(%arg0: i32) -> (i32, i32, i32) {
    %c0_i32 = arith.constant 0 : i32
    %c0_i32_0 = arith.constant 0 : i32
    %c0_i32_1 = arith.constant 0 : i32
    return %arg0, %c0_i32, %c0_i32_0 : i32, i32, i32
  }
  func.func @transform_3(%arg0: i32) -> (i32, i32, i32) {
    %c0_i32 = arith.constant 0 : i32
    %c0_i32_0 = arith.constant 0 : i32
    %c0_i32_1 = arith.constant 0 : i32
    return %arg0, %c0_i32, %c0_i32_0 : i32, i32, i32
  }
  func.func @transform_4(%arg0: i32) -> (i32, i32, i32) {
    %c0_i32 = arith.constant 0 : i32
    %c0_i32_0 = arith.constant 0 : i32
    %c0_i32_1 = arith.constant 0 : i32
    return %arg0, %c0_i32, %c0_i32_0 : i32, i32, i32
  }
  func.func @transform_5(%arg0: i32) -> (i32, i32) {
    %c0_i32 = arith.constant 0 : i32
    %c0_i32_0 = arith.constant 0 : i32
    %c0_i32_1 = arith.constant 0 : i32
    return %c0_i32, %c0_i32_0 : i32, i32
  }
}

</mosaic_0001>

<llo_original>
// kernel: made_forward.1
$region0: #{made_forward.1}
  #allocation0 [shape = 'u32[]', space=smem, size = 0x4, offset = 0x4, fixed_abs, tag = 'smem constant byte address 0x4 - core index']
  #allocation1 [shape = 'u32[72,128]{1,0:T(1,128)}', space=vmem, size = 0x9000, scoped, tag = 'internal scratch']
  #allocation2 [shape = 'f32[16,128]{1,0:T(8,128)}', space=vmem, size = 0x2000, scoped, tag = 'scratch operand']
  %s0 = inlined_call_operand.vmem [shape: f32[16,8], index: 0, kind: input, shape index: {}]
  %s1 = inlined_call_operand.vmem [shape: f32[3,1,128], index: 1, kind: input, shape index: {}]
  %s2 = inlined_call_operand.vmem [shape: f32[3,1,128], index: 2, kind: input, shape index: {}]
  %s3 = inlined_call_operand.hbm [shape: bf16[3,128,128], index: 3, kind: input, shape index: {}]
  %s4 = inlined_call_operand.vmem [shape: f32[3,1,128], index: 4, kind: input, shape index: {}]
  %s5 = inlined_call_operand.hbm [shape: f32[16,128], index: 5, kind: output, shape index: {}]
  %s6 = sld [smem:[#allocation0]]
  $region69: #{made_forward.1} parent=0
    _
  %s8 = ssub.s32 1, %s6
  %s9 = scalar_select 0, %s8, %s6
  $region1: #{made_forward.1} parent=0
    #allocation3 [shape = 'u8[65536]{0}', space=vmem, size = 0x10000, scoped, tag = 'input window, operand 3']
    #allocation4 [shape = 's32[2]{0}', space=sflag, size = 0x8, scoped, tag = 'scoped memory for made_forward.1']
    #allocation5 [shape = 's32[2]{0}', space=sflag, size = 0x8, scoped, tag = 'scoped memory for made_forward.1']
    #allocation6 [shape = 'u8[8192]{0}', space=vmem, size = 0x2000, scoped, tag = 'output window, operand 0, single buffered']
    %10 = vsyncpa [#allocation4], 0
    %s11 = scalar_lea.sflag [#allocation4], 1
    %12 = vsyncpa %s11, 0
    %13 = vsyncpa [#allocation5], 0
    loop: start=0, step=1, limit=5
    $region2: #{made_forward.1} parent=1 // loop_pre_header
      _
    $region3: #{made_forward.1} parent=1 // loop_header
      %s15 = sphi 0, %s19
      %p16 = scmp.ge.s32.totalorder %s15, 5
      %s23 = sphi 0, %s23
      %s25 = sphi 0, %s23
      %s26 = sphi 0, %s25
      %s40 = sphi 0, %s26
      %s46 = sphi 0, %s48
      %s49 = sphi 0, %s46
      %s50 = sphi 0, %s49
      %s66 = sphi 0, %s50
      %s72 = sphi 0, %s74
      %s75 = sphi 0, %s72
      %s76 = sphi 0, %s75
      %s92 = sphi 0, %s76
      %s98 = sphi 0, %s100
      %s101 = sphi 0, %s98
      %s102 = sphi 0, %s101
      %s118 = sphi 0, %s102
      %s124 = sphi 0, %s126
      %s127 = sphi 0, %s124
      %s128 = sphi 0, %s127
      %s144 = sphi 0, %s128
      %s148 = sphi 0, %s148
      %s150 = sphi 0, %s148
      %s151 = sphi 0, %s150
      %s165 = sphi 0, %s151
    $region4: #{made_forward.1} parent=1 // loop_header_branch
      %18 = sbr.rel (%p16) target = $region8
    $region5: #{made_forward.1} parent=1 // loop_body
      %s20 = ssub.s32 %s15, 1
      %s21 = ssub.s32 %s15, 2
      %s22 = sadd.s32 %s15, 1
      %s24 = sadd.s32 %s23, 1
      %p27 = scmp.eq.s32.totalorder %s15, 2
      %p28 = scmp.ne.s32.totalorder %s23, %s25
      %p29 = scmp.eq.s32.totalorder %s15, 0
      %p30 = por %p28, %p29
      %p31 = scmp.ne.s32.totalorder %s23, %s25
      %p32 = scmp.eq.s32.totalorder %s20, 2
      %p33 = por %p31, %p32
      %p34 = scmp.ne.s32.totalorder %s25, %s26
      %p35 = scmp.eq.s32.totalorder %s20, 0
      %p36 = por %p34, %p35
      %p37 = scmp.ne.s32.totalorder %s25, %s26
      %p38 = scmp.eq.s32.totalorder %s21, 2
      %p39 = por %p37, %p38
      %p41 = scmp.ne.s32.totalorder %s26, %s40
      %p42 = scmp.eq.s32.totalorder %s21, 0
      %p43 = por %p41, %p42
      %s44 = ssub.s32 %s15, %s22
      %p45 = scmp.eq.s32.totalorder %s44, 0
      %s47 = sadd.s32 %s46, 1
      %s48 = scalar_select %p45, %s46, %s47
      %p51 = pneg %p45
      %p52 = scmp.eq.s32.totalorder %s15, 2
      %p53 = por %p51, %p52
      %p54 = scmp.ne.s32.totalorder %s46, %s49
      %p55 = scmp.eq.s32.totalorder %s15, 0
      %p56 = por %p54, %p55
      %p57 = scmp.ne.s32.totalorder %s46, %s49
      %p58 = scmp.eq.s32.totalorder %s20, 2
      %p59 = por %p57, %p58
      %p60 = scmp.ne.s32.totalorder %s49, %s50
      %p61 = scmp.eq.s32.totalorder %s20, 0
      %p62 = por %p60, %p61
      %p63 = scmp.ne.s32.totalorder %s49, %s50
      %p64 = scmp.eq.s32.totalorder %s21, 2
      %p65 = por %p63, %p64
      %p67 = scmp.ne.s32.totalorder %s50, %s66
      %p68 = scmp.eq.s32.totalorder %s21, 0
      %p69 = por %p67, %p68
      %s70 = ssub.s32 %s15, %s22
      %p71 = scmp.eq.s32.totalorder %s70, 0
      %s73 = sadd.s32 %s72, 1
      %s74 = scalar_select %p71, %s72, %s73
      %p77 = pneg %p71
      %p78 = scmp.eq.s32.totalorder %s15, 2
      %p79 = por %p77, %p78
      %p80 = scmp.ne.s32.totalorder %s72, %s75
      %p81 = scmp.eq.s32.totalorder %s15, 0
      %p82 = por %p80, %p81
      %p83 = scmp.ne.s32.totalorder %s72, %s75
      %p84 = scmp.eq.s32.totalorder %s20, 2
      %p85 = por %p83, %p84
      %p86 = scmp.ne.s32.totalorder %s75, %s76
      %p87 = scmp.eq.s32.totalorder %s20, 0
      %p88 = por %p86, %p87
      %p89 = scmp.ne.s32.totalorder %s75, %s76
      %p90 = scmp.eq.s32.totalorder %s21, 2
      %p91 = por %p89, %p90
      %p93 = scmp.ne.s32.totalorder %s76, %s92
      %p94 = scmp.eq.s32.totalorder %s21, 0
      %p95 = por %p93, %p94
      %s96 = ssub.s32 %s15, %s22
      %p97 = scmp.eq.s32.totalorder %s96, 0
      %s99 = sadd.s32 %s98, 1
      %s100 = scalar_select %p97, %s98, %s99
      %p103 = pneg %p97
      %p104 = scmp.eq.s32.totalorder %s15, 2
      %p105 = por %p103, %p104
      %p106 = scmp.ne.s32.totalorder %s98, %s101
      %p107 = scmp.eq.s32.totalorder %s15, 0
      %p108 = por %p106, %p107
      %p109 = scmp.ne.s32.totalorder %s98, %s101
      %p110 = scmp.eq.s32.totalorder %s20, 2
      %p111 = por %p109, %p110
      %p112 = scmp.ne.s32.totalorder %s101, %s102
      %p113 = scmp.eq.s32.totalorder %s20, 0
      %p114 = por %p112, %p113
      %p115 = scmp.ne.s32.totalorder %s101, %s102
      %p116 = scmp.eq.s32.totalorder %s21, 2
      %p117 = por %p115, %p116
      %p119 = scmp.ne.s32.totalorder %s102, %s118
      %p120 = scmp.eq.s32.totalorder %s21, 0
      %p121 = por %p119, %p120
      %s122 = ssub.s32 %s15, %s22
      %p123 = scmp.eq.s32.totalorder %s122, 0
      %s125 = sadd.s32 %s124, 1
      %s126 = scalar_select %p123, %s124, %s125
      %p129 = pneg %p123
      %p130 = scmp.eq.s32.totalorder %s15, 2
      %p131 = por %p129, %p130
      %p132 = scmp.ne.s32.totalorder %s124, %s127
      %p133 = scmp.eq.s32.totalorder %s15, 0
      %p134 = por %p132, %p133
      %p135 = scmp.ne.s32.totalorder %s124, %s127
      %p136 = scmp.eq.s32.totalorder %s20, 2
      %p137 = por %p135, %p136
      %p138 = scmp.ne.s32.totalorder %s127, %s128
      %p139 = scmp.eq.s32.totalorder %s20, 0
      %p140 = por %p138, %p139
      %p141 = scmp.ne.s32.totalorder %s127, %s128
      %p142 = scmp.eq.s32.totalorder %s21, 2
      %p143 = por %p141, %p142
      %p145 = scmp.ne.s32.totalorder %s128, %s144
      %p146 = scmp.eq.s32.totalorder %s21, 0
      %p147 = por %p145, %p146
      %s149 = sadd.s32 %s148, 1
      %p152 = scmp.eq.s32.totalorder %s15, 2
      %p153 = scmp.ne.s32.totalorder %s148, %s150
      %p154 = scmp.eq.s32.totalorder %s15, 0
      %p155 = por %p153, %p154
      %p156 = scmp.ne.s32.totalorder %s148, %s150
      %p157 = scmp.eq.s32.totalorder %s20, 2
      %p158 = por %p156, %p157
      %p159 = scmp.ne.s32.totalorder %s150, %s151
      %p160 = scmp.eq.s32.totalorder %s20, 0
      %p161 = por %p159, %p160
      %p162 = scmp.ne.s32.totalorder %s150, %s151
      %p163 = scmp.eq.s32.totalorder %s21, 2
      %p164 = por %p162, %p163
      %p166 = scmp.ne.s32.totalorder %s151, %s165
      %p167 = scmp.eq.s32.totalorder %s21, 0
      %p168 = por %p166, %p167
      %p169 = scmp.le.s32.totalorder 1, %s15
      %p170 = scmp.lt.s32.totalorder %s15, 4
      %p171 = pnand %p169, %p170
      %p172 = pneg %p171
      // Predicated region
      $region9: #{made_forward.1} parent=5 // pred_check
        _
      $region10: #{made_forward.1} parent=5 // pred_check_branch
        %174 = sbr.rel (%p171) target = $region12
      $region11: #{made_forward.1} parent=5 // pred_region
        %s175 = ssub.s32 %s15, 1
        // Predicated region
        $region13: #{made_forward.1} parent=11 // pred_check
          %p176 = pneg %p36
        $region14: #{made_forward.1} parent=11 // pred_check_branch
          %178 = sbr.rel (%p176) target = $region16
        $region15: #{made_forward.1} parent=11 // pred_region
          _
        $region16: #{made_forward.1} parent=11 // pred_fallthru
          _
      $region12: #{made_forward.1} parent=5 // pred_fallthru
        _
      %p179 = scmp.lt.s32.totalorder %s15, 3
      // Predicated region
      $region17: #{made_forward.1} parent=5 // pred_check
        %p180 = pneg %p179
      $region18: #{made_forward.1} parent=5 // pred_check_branch
        %182 = sbr.rel (%p180) target = $region20
      $region19: #{made_forward.1} parent=5 // pred_region
        // Predicated region
        $region21: #{made_forward.1} parent=19 // pred_check
          %p183 = pneg %p56
        $region22: #{made_forward.1} parent=19 // pred_check_branch
          %185 = sbr.rel (%p183) target = $region24
        $region23: #{made_forward.1} parent=19 // pred_region
          %p186 = scmp.lt.s32.totalorder %s15, 2
          %s187 = scalar_select %p186, %s15, 2
          %s188 = scalar_lea.vmem %s1, %s187
        $region24: #{made_forward.1} parent=19 // pred_fallthru
          _
        // Predicated region
        $region25: #{made_forward.1} parent=19 // pred_check
          %p189 = pneg %p82
        $region26: #{made_forward.1} parent=19 // pred_check_branch
          %191 = sbr.rel (%p189) target = $region28
        $region27: #{made_forward.1} parent=19 // pred_region
          %p192 = scmp.lt.s32.totalorder %s15, 2
          %s193 = scalar_select %p192, %s15, 2
          %s194 = scalar_lea.vmem %s2, %s193
        $region28: #{made_forward.1} parent=19 // pred_fallthru
          _
        // Predicated region
        $region29: #{made_forward.1} parent=19 // pred_check
          %p195 = pneg %p108
        $region30: #{made_forward.1} parent=19 // pred_check_branch
          %197 = sbr.rel (%p195) target = $region32
        $region31: #{made_forward.1} parent=19 // pred_region
          %s198 = sand.u32 %s98, 1
          %s199 = scalar_lea.sflag [#allocation4], %s198
          %s200 = sand.u32 %s98, 1
          %s201 = smul.addr %s200, 64
          %s202 = scalar_lea.vmem [#allocation3], %s201
          %204 = vsyncadd %s199, 0
          %s205 = smul.addr %s15, 16
          %s206 = smul.addr %s205, 4
          %s207 = scalar_lea.hbm %s3, %s206
          %s208 = sshll.u32 %s207, 4
          %s209 = int_to_ptr.hbm [resolvable:$true] %s208
          %s210 = sshll.u32 %s202, 4
          %s211 = int_to_ptr.vmem [resolvable:$true] %s210
          %216 = dma.hbm_to_vmem [thread:$0]  %s209, 1024, %s211, %s199, 64, 64, 4
        $region32: #{made_forward.1} parent=19 // pred_fallthru
          _
        // Predicated region
        $region33: #{made_forward.1} parent=19 // pred_check
          %p217 = pneg %p134
        $region34: #{made_forward.1} parent=19 // pred_check_branch
          %219 = sbr.rel (%p217) target = $region36
        $region35: #{made_forward.1} parent=19 // pred_region
          %p220 = scmp.lt.s32.totalorder %s15, 2
          %s221 = scalar_select %p220, %s15, 2
          %s222 = scalar_lea.vmem %s4, %s221
        $region36: #{made_forward.1} parent=19 // pred_fallthru
          _
      $region20: #{made_forward.1} parent=5 // pred_fallthru
        _
      %p223 = scmp.le.s32.totalorder 1, %s15
      %p224 = scmp.lt.s32.totalorder %s15, 4
      %p225 = pnand %p223, %p224
      %p226 = pneg %p225
      // Predicated region
      $region37: #{made_forward.1} parent=5 // pred_check
        _
      $region38: #{made_forward.1} parent=5 // pred_check_branch
        %228 = sbr.rel (%p225) target = $region40
      $region39: #{made_forward.1} parent=5 // pred_region
        %s229 = ssub.s32 %s15, 1
        %s230 = sand.u32 %s101, 1
        %s231 = scalar_lea.sflag [#allocation4], %s230
        %s232 = sand.u32 %s101, 1
        %s233 = smul.addr %s232, 64
        %s234 = scalar_lea.vmem [#allocation3], %s233
        // Predicated region
        $region41: #{made_forward.1} parent=39 // pred_check
          %p235 = pneg %p114
        $region42: #{made_forward.1} parent=39 // pred_check_branch
          %237 = sbr.rel (%p235) target = $region44
        $region43: #{made_forward.1} parent=39 // pred_region
          %239 = dma.done %s231, 1024
        $region44: #{made_forward.1} parent=39 // pred_fallthru
          _
        %p240 = pneg %p36
        %p241 = pneg %p33
        %p242 = scmp.lt.s32.totalorder %s20, 2
        %s243 = scalar_select %p242, %s20, 2
        %s244 = scalar_lea.vmem %s1, %s243
        %p245 = pneg %p62
        %p246 = pneg %p59
        %p247 = scmp.lt.s32.totalorder %s20, 2
        %s248 = scalar_select %p247, %s20, 2
        %s249 = scalar_lea.vmem %s2, %s248
        %p250 = pneg %p88
        %p251 = pneg %p85
        %s252 = sand.u32 %s101, 1
        %s253 = scalar_lea.sflag [#allocation4], %s252
        %s254 = sand.u32 %s101, 1
        %s255 = smul.addr %s254, 64
        %s256 = scalar_lea.vmem [#allocation3], %s255
        %p257 = pneg %p114
        %p258 = pneg %p111
        %p259 = scmp.lt.s32.totalorder %s20, 2
        %s260 = scalar_select %p259, %s20, 2
        %s261 = scalar_lea.vmem %s4, %s260
        %p262 = pneg %p140
        %p263 = pneg %p137
        %p264 = pneg %p161
        %p265 = pneg %p158
        %p266 = scmp.lt.s32.totalorder %s20, 2
        %s267 = scalar_select %p266, %s20, 2
        %s268 = scalar_lea.vmem %s1, %s267
        %p269 = scmp.lt.s32.totalorder %s20, 2
        %s270 = scalar_select %p269, %s20, 2
        %s271 = scalar_lea.vmem %s2, %s270
        %p272 = scmp.lt.s32.totalorder %s20, 2
        %s273 = scalar_select %p272, %s20, 2
        %s274 = scalar_lea.vmem %s4, %s273
        %p275 = scmp.eq.s32.totalorder %s20, 0
        // Predicated region
        $region45: #{made_forward.1} parent=39 // pred_check
          %p276 = pneg %p275
        $region46: #{made_forward.1} parent=39 // pred_check_branch
          %278 = sbr.rel (%p276) target = $region48
        $region47: #{made_forward.1} parent=39 // pred_region
          %279 = vst [vmem:[#allocation2] sm:$0xff] 0.0
          %280 = vst [vmem:[#allocation2 + $0x8] sm:$0xff] 0.0
          %v281 = vld [vmem:[%s0] sm:$0xff]
          %v282 = vld [vmem:[%s0 + $0x8] sm:$0xff]
          %vm283 = vcmask 64512
          %284 = vst.msk [vmem:[#allocation2] sm:$0xff] %vm283, %v281
          %285 = vst.msk [vmem:[#allocation2 + $0x8] sm:$0xff] %vm283, %v282
        $region48: #{made_forward.1} parent=39 // pred_fallthru
          _
        %v286 = vld [vmem:[#allocation2] sm:$0xff]
        %v287 = vld [vmem:[#allocation2 + $0x8] sm:$0xff]
        %v288 = vadd.f32 %v286, %v287
        %v289 = vrot.slane %v288, 4
        %v290 = vadd.f32 %v288, %v289
        %v291 = vrot.slane %v290, 2
        %v292 = vadd.f32 %v290, %v291
        %v293 = vrot.slane %v292, 1
        %v294 = vadd.f32 %v292, %v293
        %v295 = vmul.f32 %v286, %v286
        %v296 = vmul.f32 %v287, %v287
        %v297 = vadd.f32 %v295, %v296
        %v298 = vrot.slane %v297, 4
        %v299 = vadd.f32 %v297, %v298
        %v300 = vrot.slane %v299, 2
        %v301 = vadd.f32 %v299, %v300
        %v302 = vrot.slane %v301, 1
        %v303 = vadd.f32 %v301, %v302
        %v304 = vmul.f32 %v294, 0.0625
        %v305 = vmul.f32 %v303, 0.0625
        %v306 = vmul.f32 %v304, %v304
        %v307 = vsub.f32 %v305, %v306
        %v308 = vmax.f32 %v307, 0.0
        %v309 = vld [vmem:[%s268] sm:$0x1]
        %v310 = vadd.f32 %v308, 1e-05
        %v311 = vrsqrt.pop %v310
        %v312 = vmul.f32 %v311, %v310
        %v313 = vmul.f32 %v312, %v311
        %v314 = vmul.f32 0.5, %v313
        %v315 = vsub.f32 1.5, %v314
        %v316 = vmul.f32 %v311, %v315
        %vm317 = vweird.f32 %v310
        %vm318 = vweird.f32 %v311
        %vm319 = vmor %vm317, %vm318
        %v320 = vsel %vm319, %v311, %v316
        %v321 = vmul.f32 %v309, %v320
        %v322 = vld [vmem:[%s271] sm:$0x1]
        %v323 = vmul.f32 %v304, %v321
        %v324 = vsub.f32 %v322, %v323
        %v326 = vperm.slane %v321, 0
        %v328 = vmul.f32 %v286, %v326
        %v329 = vmul.f32 %v287, %v326
        %v331 = vperm.slane %v324, 0
        %v333 = vadd.f32 %v328, %v331
        %v334 = vadd.f32 %v329, %v331
        %v335 = vpack.c.bf16 %v334, %v333
        %v336 = vld [vmem:[%s234] sm:$0xf]
        %v337 = vld [vmem:[%s234 + $0x4] sm:$0xf]
        %v338 = vld [vmem:[%s234 + $0x8] sm:$0xf]
        %v339 = vld [vmem:[%s234 + $0xc] sm:$0xf]
        %v340 = vld [vmem:[%s234 + $0x10] sm:$0xf]
        %v341 = vld [vmem:[%s234 + $0x14] sm:$0xf]
        %v342 = vld [vmem:[%s234 + $0x18] sm:$0xf]
        %v343 = vld [vmem:[%s234 + $0x1c] sm:$0xf]
        %v344 = vld [vmem:[%s234 + $0x20] sm:$0xf]
        %v345 = vld [vmem:[%s234 + $0x24] sm:$0xf]
        %v346 = vld [vmem:[%s234 + $0x28] sm:$0xf]
        %v347 = vld [vmem:[%s234 + $0x2c] sm:$0xf]
        %v348 = vld [vmem:[%s234 + $0x30] sm:$0xf]
        %v349 = vld [vmem:[%s234 + $0x34] sm:$0xf]
        %v350 = vld [vmem:[%s234 + $0x38] sm:$0xf]
        %v351 = vld [vmem:[%s234 + $0x3c] sm:$0xf]
        %v352 = vld [vmem:[%s274] sm:$0x1]
        %v354 = vperm.slane %v352, 0
        %v372 = vunpack.c.l.b16 %v336
        %v373 = vunpack.c.l.b16 %v337
        %v374 = vunpack.c.l.b16 %v338
        %v375 = vunpack.c.l.b16 %v339
        %v376 = vunpack.c.l.b16 %v340
        %v377 = vunpack.c.l.b16 %v341
        %v378 = vunpack.c.l.b16 %v342
        %v379 = vunpack.c.l.b16 %v343
        %v380 = vunpack.c.l.b16 %v344
        %v381 = vunpack.c.l.b16 %v345
        %v382 = vunpack.c.l.b16 %v346
        %v383 = vunpack.c.l.b16 %v347
        %v384 = vunpack.c.l.b16 %v348
        %v385 = vunpack.c.l.b16 %v349
        %v386 = vunpack.c.l.b16 %v350
        %v387 = vunpack.c.l.b16 %v351
        %v388 = vpack.c.b16 %v373, %v372
        %v389 = vpack.c.b16 %v375, %v374
        %v390 = vpack.c.b16 %v377, %v376
        %v391 = vpack.c.b16 %v379, %v378
        %v392 = vpack.c.b16 %v381, %v380
        %v393 = vpack.c.b16 %v383, %v382
        %v394 = vpack.c.b16 %v385, %v384
        %v395 = vpack.c.b16 %v387, %v386
        %404 = vmatpush.bf16.msra.mxu0 %v395
        %405 = vmatpush.bf16.msra.mxu0 %v394
        %406 = vmatpush.bf16.msra.mxu0 %v393
        %407 = vmatpush.bf16.msra.mxu0 %v392
        %408 = vmatpush.bf16.msra.mxu0 %v391
        %409 = vmatpush.bf16.msra.mxu0 %v390
        %410 = vmatpush.bf16.msra.mxu0 %v389
        %411 = vmatpush.bf16.msra.mxu0 %v388
        %412 = vmatmul.bf16.gmra.mxu0 %v335
        %v413 = vpop.f32.mrf.mxu0
        %v414 = vadd.f32 %v354, %v413
        %v415 = vpop.f32.mrf.mxu0
        %v416 = vadd.f32 %v354, %v415
        %417 = vdwg.mxu0
        %p418 = scmp.lt.s32.totalorder %s20, 2
        // Predicated region
        $region49: #{made_forward.1} parent=39 // pred_check
          %p419 = pneg %p418
        $region50: #{made_forward.1} parent=39 // pred_check_branch
          %421 = sbr.rel (%p419) target = $region52
        $region51: #{made_forward.1} parent=39 // pred_region
          %v422 = vmax.f32 %v414, 0.0
          %v423 = vmax.f32 %v416, 0.0
          %424 = vst [vmem:[#allocation2] sm:$0xff] %v422
          %425 = vst [vmem:[#allocation2 + $0x8] sm:$0xff] %v423
        $region52: #{made_forward.1} parent=39 // pred_fallthru
          _
        %p426 = scmp.eq.s32.totalorder %s20, 2
        // Predicated region
        $region53: #{made_forward.1} parent=39 // pred_check
          %p427 = pneg %p426
        $region54: #{made_forward.1} parent=39 // pred_check_branch
          %429 = sbr.rel (%p427) target = $region56
        $region55: #{made_forward.1} parent=39 // pred_region
          %430 = vst [vmem:[#allocation6] sm:$0xff] %v414
          %431 = vst [vmem:[#allocation6 + $0x8] sm:$0xff] %v416
        $region56: #{made_forward.1} parent=39 // pred_fallthru
          _
        // Predicated region
        $region57: #{made_forward.1} parent=39 // pred_check
          %p432 = pneg %p158
        $region58: #{made_forward.1} parent=39 // pred_check_branch
          %434 = sbr.rel (%p432) target = $region60
        $region59: #{made_forward.1} parent=39 // pred_region
          %436 = vsyncadd [#allocation5], 0
          %s437 = sshll.u32 [#allocation6], 4
          %s438 = int_to_ptr.vmem [resolvable:$true] %s437
          %s439 = sshll.u32 %s5, 4
          %s440 = int_to_ptr.hbm [resolvable:$true] %s439
          %445 = dma.vmem_to_hbm [thread:$0]  %s438, 256, %s440, [#allocation5], 128, 128, 8
        $region60: #{made_forward.1} parent=39 // pred_fallthru
          _
        // Predicated region
        $region61: #{made_forward.1} parent=39 // pred_check
          %p446 = pneg %p158
        $region62: #{made_forward.1} parent=39 // pred_check_branch
          %448 = sbr.rel (%p446) target = $region64
        $region63: #{made_forward.1} parent=39 // pred_region
          %450 = dma.done [#allocation5], 256
        $region64: #{made_forward.1} parent=39 // pred_fallthru
          _
      $region40: #{made_forward.1} parent=5 // pred_fallthru
        _
      %p451 = scmp.le.s32.totalorder 2, %s15
      // Predicated region
      $region65: #{made_forward.1} parent=5 // pred_check
        %p452 = pneg %p451
      $region66: #{made_forward.1} parent=5 // pred_check_branch
        %454 = sbr.rel (%p452) target = $region68
      $region67: #{made_forward.1} parent=5 // pred_region
        %s455 = ssub.s32 %s15, 2
      $region68: #{made_forward.1} parent=5 // pred_fallthru
        _
    $region6: #{made_forward.1} parent=1 // loop_footer
      %s19 = sadd.s32 1, %s15
    $region7: #{made_forward.1} parent=1 // loop_footer_branch
      %14 = sbr.rel target = $region3
    $region8: #{made_forward.1} parent=1 // loop_exit
      _
    %456 = vsyncpa [#allocation4], 1
    %s457 = scalar_lea.sflag [#allocation4], 1
    %458 = vsyncpa %s457, 1
    %459 = vsyncpa [#allocation5], 1
    %s460 = scalar_lea.sflag [#allocation5], 1
    %461 = vsyncpa %s460, 1

</llo_original>
